<compile_context>
chip_gen: v5e
topology: v5e:2x2
jax: 0.10.0
libtpu: 0.0.40
codegen_flags: <defaults>
</compile_context>

<pallas_src>
import functools

import jax
import jax.numpy as jnp
from jax import lax
from jax.experimental import pallas as pl
from jax.experimental.pallas import tpu as pltpu

BN_EPS = 1e-5
LANE = 128
SUBLANE = 8


def _round_up(x, m):
    return (x + m - 1) // m * m


# ----------------------------------------------------------------------------
# One-off probe: pin down pltpu.roll's rotation sign so the tap shifts match
# np.roll semantics (out[i] = x[i - shift]) on every JAX/Mosaic version.
# ----------------------------------------------------------------------------
@functools.lru_cache(maxsize=None)
def _roll_sign():
    def kern(x_ref, o_ref):
        o_ref[...] = pltpu.roll(x_ref[...], 1, axis=0)

    x = jnp.arange(8 * 128, dtype=jnp.float32).reshape(8, 128)
    out = jax.device_get(
        pl.pallas_call(kern,
                       out_shape=jax.ShapeDtypeStruct((8, 128), jnp.float32))(x))
    # np.roll convention -> row 0 lands in row 1.
    return 1 if float(out[1, 0]) == 0.0 else -1


# ----------------------------------------------------------------------------
# Fused kernel (one batch element per grid step):
#   embedding (bf16 one-hot matmul) + 3x [fused K-tap conv matmul + folded-BN
#   bias + ReLU], activation resident in VMEM throughout.
# ----------------------------------------------------------------------------
def fused_encoder_kernel(seq_ref, table_ref, w_ref, b_ref, o_ref, *,
                         n_layers, ksize, t_valid, roll_sign):
    # seq_ref:   (t_pad, 1)          int32  token ids of this batch element
    # table_ref: (Vp, Cp)            bf16   embedding table (zero-padded)
    # w_ref:     (L, K*Cp, Cp)       bf16   BN-folded conv weights, tap-major rows
    # b_ref:     (L, 1, Cp)          f32    BN-folded bias
    # o_ref:     (t_pad, Cp)         f32
    tile_m, _ = seq_ref.shape
    vp, cp = table_ref.shape
    pad = (ksize - 1) // 2

    # ---- Embedding: lane-dense one-hot (exact 0/1 in bf16) on the MXU ----
    vocab_lane = lax.broadcasted_iota(jnp.int32, (tile_m, vp), 1)
    onehot = (vocab_lane == seq_ref[...]).astype(jnp.bfloat16)
    act = jnp.dot(onehot, table_ref[...], preferred_element_type=jnp.float32)

    # Halo-row mask, hoisted out of the layer loop: rows t >= T are padding and
    # must be zero before each conv so the wrapped rolls reproduce the conv
    # zero padding and batch isolation (bias+ReLU makes them nonzero again).
    row = lax.broadcasted_iota(jnp.int32, (tile_m, 1), 0)
    halo_mask = jnp.broadcast_to((row < t_valid).astype(jnp.float32),
                                 (tile_m, cp))

    # ---- conv layers: one fused (M, K*Cp) @ (K*Cp, Cp) matmul per layer ----
    for l in range(n_layers):
        x = act * halo_mask                     # single re-zeroing of halo rows
        parts = []
        for k in range(ksize):
            delta = k - pad                     # tap k reads x[t + delta]
            if delta == 0:
                parts.append(x)
            else:
                # Rotation is modular; wrap-around reads hit zeroed halo rows.
                parts.append(pltpu.roll(x, (-delta * roll_sign) % tile_m,
                                        axis=0))
        # Concatenate shifted copies along lanes (tap-major, matching the
        # (K*Cp, Cp) weight layout) and cast to bf16 for the MXU.
        xcat = jnp.concatenate(parts, axis=1).astype(jnp.bfloat16)
        acc = jnp.dot(xcat, w_ref[l], preferred_element_type=jnp.float32)
        act = jnp.maximum(acc + b_ref[l], 0.0)
        # TODO(synk): training-mode Dropout(0.5) / batch-statistics BatchNorm
        # are stochastic / batch-dependent and not reproduced (inference
        # semantics: dropout = identity, BN = running stats).

    o_ref[...] = act.astype(o_ref.dtype)


# ----------------------------------------------------------------------------
# Wrapper: fold BN into weights, pad channels/vocab to 128 lanes, reshape the
# weights to (K*Cp, Cp), cast matmul operands to bf16, flatten B*t_pad.
# ----------------------------------------------------------------------------
def _build_fused_params(params, cp):
    layers = params["layers"]
    n_layers = len(layers)
    ksize = layers[0]["w"].shape[0]

    w_all = jnp.zeros((n_layers, ksize * cp, cp), jnp.float32)
    b_all = jnp.zeros((n_layers, 1, cp), jnp.float32)
    for l, layer in enumerate(layers):
        w = layer["w"]                                        # (K, Cin, Cout)
        k, cin, cout = w.shape
        scale = layer["gamma"] * lax.rsqrt(layer["var"] + BN_EPS)   # (Cout,)
        bias = layer["beta"] - layer["mean"] * scale                # (Cout,)
        wl = jnp.zeros((k, cp, cp), jnp.float32).at[:, :cin, :cout].set(
            w * scale[None, None, :])
        w_all = w_all.at[l].set(wl.reshape(k * cp, cp))       # tap-major rows
        b_all = b_all.at[l, 0, :cout].set(bias)

    table = params["embed"]                                   # (V, E)
    v, e = table.shape
    vp = _round_up(v, LANE)
    table_p = jnp.zeros((vp, cp), jnp.float32).at[:v, :e].set(table)

    # bf16 MXU operands; accumulation stays f32 in-kernel.
    return table_p.astype(jnp.bfloat16), w_all.astype(jnp.bfloat16), b_all


def conv_encoder_forward(seqs, params):
    b, t = seqs.shape
    _, e = params["embed"].shape
    layers = params["layers"]
    n_layers = len(layers)
    ksize, _, cout = layers[0]["w"].shape
    pad = (ksize - 1) // 2

    cp = _round_up(max(e, cout), LANE)            # common padded channel width
    t_pad = _round_up(t + 2 * pad, SUBLANE)       # per-batch zero halo >= 2*pad
    m = b * t_pad                                 # flattened M dimension

    table_p, w_all, b_all = _build_fused_params(params, cp)
    vp = table_p.shape[0]

    seq_p = jnp.zeros((b, t_pad), jnp.int32).at[:, :t].set(seqs.astype(jnp.int32))
    seq_flat = seq_p.reshape(m, 1)

    kernel = functools.partial(
        fused_encoder_kernel,
        n_layers=n_layers, ksize=ksize, t_valid=t, roll_sign=_roll_sign())

    grid_spec = pltpu.PrefetchScalarGridSpec(
        num_scalar_prefetch=0,
        grid=(b,),                                 # one batch element per step
        in_specs=[
            pl.BlockSpec((t_pad, 1), lambda i: (i, 0)),
            # Constant-index blocks: DMA'd once and revisited across the grid.
            # (At production channel counts add pipeline_mode=pl.Buffered(1)
            #  and an explicit vmem_limit_bytes on v7x.)
            pl.BlockSpec((vp, cp), lambda i: (0, 0)),
            pl.BlockSpec((n_layers, ksize * cp, cp), lambda i: (0, 0, 0)),
            pl.BlockSpec((n_layers, 1, cp), lambda i: (0, 0, 0)),
        ],
        out_specs=pl.BlockSpec((t_pad, cp), lambda i: (i, 0)),
    )

    out = pl.pallas_call(
        kernel,
        out_shape=jax.ShapeDtypeStruct((m, cp), jnp.float32),
        grid_spec=grid_spec,
        compiler_params=pltpu.CompilerParams(
            dimension_semantics=("parallel",)),
    )(seq_flat, table_p, w_all, b_all)

    # TODO(synk): downstream consumers that accept the padded (B, t_pad, Cp)
    # layout can skip this narrow-store slice entirely.
    return out.reshape(b, t_pad, cp)[:, :t, :cout]


# ----------------------------------------------------------------------------
# Parameter init (convention: w[k] == torch_w[:, :, k].T).
# ----------------------------------------------------------------------------
def init_params(key, num_vocab, embed_dim, conv_layers, conv_channels,
                conv_kernel_size):
    keys = jax.random.split(key, conv_layers + 1)
    table = 0.1 * jax.random.normal(keys[0], (num_vocab, embed_dim), jnp.float32)
    table = table.at[0].set(0.0)                         # padding_idx=0
    layers = []
    for l in range(conv_layers):
        cin = embed_dim if l == 0 else conv_channels
        w = 0.1 * jax.random.normal(
            keys[l + 1], (conv_kernel_size, cin, conv_channels), jnp.float32)
        layers.append(dict(
            w=w,
            gamma=jnp.ones((conv_channels,), jnp.float32),
            beta=jnp.zeros((conv_channels,), jnp.float32),
            mean=jnp.zeros((conv_channels,), jnp.float32),
            var=jnp.ones((conv_channels,), jnp.float32),
        ))
    return dict(embed=table, layers=layers)


# ----------------------------------------------------------------------------
# Pure-JAX reference (f32; correctness check).
# ----------------------------------------------------------------------------
def reference_forward(seqs, params):
    x = jnp.take(params["embed"], seqs, axis=0)          # (B, T, E)
    for layer in params["layers"]:
        y = lax.conv_general_dilated(
            x, layer["w"], window_strides=(1,),
            padding=((2, 2),), dimension_numbers=("NWC", "WIO", "NWC"))
        inv = lax.rsqrt(layer["var"] + BN_EPS)
        y = (y - layer["mean"]) * inv * layer["gamma"] + layer["beta"]
        x = jnp.maximum(y, 0.0)
    return x


if __name__ == "__main__":
    # Small shapes consistent with the module (scaled-down hidden size).
    # T=17 exercises the time-padding / halo-row path.
    B, T = 2, 17
    num_vocab, embed_dim = 40, 32
    conv_layers, conv_channels, conv_kernel_size = 3, 32, 5

    key = jax.random.PRNGKey(0)
    k_param, k_seq = jax.random.split(key)
    params = init_params(k_param, num_vocab, embed_dim, conv_layers,
                         conv_channels, conv_kernel_size)
    seqs = jax.random.randint(k_seq, (B, T), 0, num_vocab, dtype=jnp.int32)

    out = conv_encoder_forward(seqs, params)
    out = jax.block_until_ready(out)

    ref = reference_forward(seqs, params)
    assert out.shape == (B, T, conv_channels)
    # bf16 MXU operands (f32 accumulate) -> wider tolerance than pure f32.
    assert jnp.allclose(out, ref, atol=2e-2, rtol=2e-2), "mismatch vs reference"

    print("KERNEL_OK")
</pallas_src>

<mosaic_0001>
module attributes {stable_mosaic.version = 11 : i64} {
  func.func @kern(%arg0: memref<8x128xf32, #tpu.memory_space<vmem>>, %arg1: memref<8x128xf32, #tpu.memory_space<vmem>>) attributes {dimension_semantics = [], scalar_prefetch = 0 : i64, scratch_operands = 0 : i64, tpu.core_type = #tpu.core_type<tc>} {
    %c0 = arith.constant 0 : index
    %c0_0 = arith.constant 0 : index
    %0 = vector.load %arg0[%c0, %c0_0] : memref<8x128xf32, #tpu.memory_space<vmem>>, vector<8x128xf32>
    %c1_i32 = arith.constant 1 : i32
    %1 = tpu.dynamic_rotate %0 by %c1_i32 dim 0 : vector<8x128xf32>, i32 -> vector<8x128xf32>
    %c0_1 = arith.constant 0 : index
    %c0_2 = arith.constant 0 : index
    %2 = vector.load %arg1[%c0_1, %c0_2] : memref<8x128xf32, #tpu.memory_space<vmem>>, vector<8x128xf32>
    tpu.vector_store %arg1[%c0_1, %c0_2], %1 {strides = array<i32>} : memref<8x128xf32, #tpu.memory_space<vmem>>, vector<8x128xf32>,
    return
  }
}

</mosaic_0001>

<llo_original>
// kernel: tpu_custom_call.1
$region0: #{tpu_custom_call.1}
  #allocation0 [shape = 'u32[]', space=smem, size = 0x4, offset = 0x4, fixed_abs, tag = 'smem constant byte address 0x4 - core index']
  #allocation1 [shape = 'u32[72,128]{1,0:T(1,128)}', space=vmem, size = 0x9000, scoped, tag = 'internal scratch']
  %s0 = inlined_call_operand.hbm [shape: f32[8,128], index: 0, kind: input, shape index: {}]
  %s1 = inlined_call_operand.hbm [shape: f32[8,128], index: 1, kind: output, shape index: {}]
  %s2 = sld [smem:[#allocation0]]
  $region18: #{tpu_custom_call.1} parent=0
    _
  %s4 = ssub.s32 1, %s2
  %s5 = scalar_select 0, %s4, %s2
  $region1: #{tpu_custom_call.1} parent=0
    #allocation2 [shape = 'u8[4096]{0}', space=vmem, size = 0x1000, scoped, tag = 'input window, operand 0, single buffered']
    #allocation3 [shape = 's32[1]{0}', space=sflag, size = 0x4, scoped, tag = 'scoped memory for tpu_custom_call.1']
    #allocation4 [shape = 's32[1]{0}', space=sflag, size = 0x4, scoped, tag = 'scoped memory for tpu_custom_call.1']
    #allocation5 [shape = 'u8[4096]{0}', space=vmem, size = 0x1000, scoped, tag = 'output window, operand 0, single buffered']
    %6 = vsyncpa [#allocation3], 0
    %7 = vsyncpa [#allocation4], 0
    // Predicated region
    $region2: #{tpu_custom_call.1} parent=1 // pred_check
      _
    $region3: #{tpu_custom_call.1} parent=1 // pred_check_branch
      %9 = sbr.rel (0) target = $region5
    $region4: #{tpu_custom_call.1} parent=1 // pred_region
      %11 = vsyncadd [#allocation3], 0
      %s13 = sshll.u32 %s0, 4
      %s14 = int_to_ptr.hbm [resolvable:$true] %s13
      %s15 = sshll.u32 [#allocation2], 4
      %s16 = int_to_ptr.vmem [resolvable:$true] %s15
      %18 = dma.hbm_to_vmem [thread:$0]  %s14, 128, %s16, [#allocation3]
    $region5: #{tpu_custom_call.1} parent=1 // pred_fallthru
      _
    // Predicated region
    $region6: #{tpu_custom_call.1} parent=1 // pred_check
      _
    $region7: #{tpu_custom_call.1} parent=1 // pred_check_branch
      %20 = sbr.rel (0) target = $region9
    $region8: #{tpu_custom_call.1} parent=1 // pred_region
      %22 = dma.done [#allocation3], 128
    $region9: #{tpu_custom_call.1} parent=1 // pred_fallthru
      _
    %v23 = vld [vmem:[#allocation2] sm:$0xff]
    %v24 = vrot.slane %v23, 7
    %25 = vst [vmem:[#allocation5] sm:$0xff] %v24
    // Predicated region
    $region10: #{tpu_custom_call.1} parent=1 // pred_check
      _
    $region11: #{tpu_custom_call.1} parent=1 // pred_check_branch
      %27 = sbr.rel (0) target = $region13
    $region12: #{tpu_custom_call.1} parent=1 // pred_region
      %29 = vsyncadd [#allocation4], 0
      %s31 = sshll.u32 [#allocation5], 4
      %s32 = int_to_ptr.vmem [resolvable:$true] %s31
      %s33 = sshll.u32 %s1, 4
      %s34 = int_to_ptr.hbm [resolvable:$true] %s33
      %36 = dma.vmem_to_hbm [thread:$0]  %s32, 128, %s34, [#allocation4]
    $region13: #{tpu_custom_call.1} parent=1 // pred_fallthru
      _
    // Predicated region
    $region14: #{tpu_custom_call.1} parent=1 // pred_check
      _
    $region15: #{tpu_custom_call.1} parent=1 // pred_check_branch
      %38 = sbr.rel (0) target = $region17
    $region16: #{tpu_custom_call.1} parent=1 // pred_region
      %40 = dma.done [#allocation4], 128
    $region17: #{tpu_custom_call.1} parent=1 // pred_fallthru
      _
    %41 = vsyncpa [#allocation3], 1
    %42 = vsyncpa [#allocation4], 1

</llo_original>
